<compile_context>
chip_gen: v6e
topology: v6e:2x2x1
jax: 0.10.0
libtpu: 0.0.40
codegen_flags: <defaults>
</compile_context>

<pallas_src>
import functools

import jax
import jax.numpy as jnp
from jax.experimental import pallas as pl
from jax.experimental.pallas import tpu as pltpu

_BN_EPS = 1e-5


# ----------------------------------------------------------------------------
# Pallas kernel
# ----------------------------------------------------------------------------
def _detector_kernel(pooler_ref, w1_ref, wrest_ref, fslab_ref, out_ref,
                     *, dim, proj):
    f32 = jnp.float32
    bf16 = jnp.bfloat16
    B = pooler_ref.shape[0]
    d2 = 2 * dim

    # Bias / scalar slab (one item per sublane row -> all loads start at lane 0).
    b1 = fslab_ref[0:1, 0:d2]            # fused [b1_c | b1_s]   (BN folded)
    b3 = fslab_ref[1:2, 0:d2]            # fused [b_recal | b_p] (BN folded)
    bpre = fslab_ref[2:3, 0:dim]         # pre_classifier bias
    wc_row = fslab_ref[3:4, 0:dim]       # main classifier weight (VPU path)
    ba = fslab_ref[4:5, 0:1]             # aux classifier bias
    bc = fslab_ref[4:5, 1:2]             # main classifier bias

    pooler = pooler_ref[...].astype(bf16)                              # cast in-kernel

    # GEMM 1: fused c/s separation layer 1 (BN folded): h1 = [h_c | h_s].
    h1 = jnp.dot(pooler, w1_ref[...], preferred_element_type=f32)      # (B, 2*dim)
    h1 = jnp.maximum(h1 + b1, 0.0)

    # GEMM 2: block-diagonal separation layer 2 with the aux classifier folded
    # in as an extra column (w2s @ wa):
    #   cs = [t_feature (0:dim) | c_feature (dim:2dim) | t_logit_raw (2dim) | 0]
    cs = jnp.dot(h1.astype(bf16), wrest_ref[:, 0:128],
                 preferred_element_type=f32)                           # (B, 128)
    cs64 = cs[:, 0:d2]                                                 # [t | c]
    t_logit = cs[:, d2:d2 + 1] + ba

    # GEMM 3: fused recalibration + predictionMLP layer 1 (BN folded); weight
    # rows for the t_feature lanes are zero so the full [t|c] block can be fed.
    h2 = jnp.dot(cs64.astype(bf16), wrest_ref[:, 128:128 + d2],
                 preferred_element_type=f32)                           # (B, 2*dim)
    h2 = jnp.maximum(h2 + b3, 0.0)                                     # [recal | hp]

    # GEMM 4 input: [recal + t_feature | hp]  (masked add, pure VPU).
    lane = jax.lax.broadcasted_iota(jnp.int32, (B, d2), 1)
    g4 = h2 + jnp.where(lane < dim, cs64, 0.0)

    # GEMM 4: block-diag (wp2 | wpre): out4 = [c_feature_proj | pre_pool_raw].
    out4 = jnp.dot(g4.astype(bf16), wrest_ref[:, 256:256 + proj + dim],
                   preferred_element_type=f32)                         # (B, proj+dim)
    pool2 = jnp.maximum(out4[:, proj:proj + dim] + bpre, 0.0)          # dropout = id

    # Main classifier on VPU + lane reduce (N=1: no MXU push).
    logit = jnp.sum(pool2 * wc_row, axis=-1, keepdims=True) + bc
    probs = jax.nn.sigmoid(jnp.concatenate([logit, t_logit], axis=-1))  # [out | t_out]

    # Output slab: [c_feature_proj | t_feature | c_feature | output | t_output | pad]
    # proj block -> two unmasked, lane-aligned full-vreg stores.
    out_ref[:, 0:proj] = out4[:, 0:proj]
    # Last 128-lane vreg: [t_feature | c_feature | probs | 0-pad].
    pad = 128 - (d2 + 2)
    tail = jnp.concatenate([cs64, probs, jnp.zeros((B, pad), f32)], axis=-1)
    out_ref[:, proj:proj + 128] = tail


# ----------------------------------------------------------------------------
# Wrapper: BN folding, branch fusion, slab packing, output un-packing
# ----------------------------------------------------------------------------
def _fold_bn(w, bn):
    """Fold eval-mode BatchNorm1d into a bias-free Linear stored as (in, out)."""
    gamma, beta, mean, var = bn[0], bn[1], bn[2], bn[3]
    scale = gamma * jax.lax.rsqrt(var + _BN_EPS)                        # (out,)
    return w * scale[None, :], (beta - mean * scale)[None, :]


def pack_params(params):
    """Run ONCE at setup (eager / host side). Not for per-step tracing."""
    dim = params["w2c"].shape[0]
    proj = params["wp2"].shape[1]
    d2 = 2 * dim
    f32 = jnp.float32
    assert proj % 128 == 0 and d2 + 2 <= 128

    # Separation branches, layer 1 (fused, BN folded).
    w1c, b1c = _fold_bn(params["w1c"], params["bn_c"])
    w1s, b1s = _fold_bn(params["w1s"], params["bn_s"])
    w1 = jnp.concatenate([w1c, w1s], axis=1)                            # (768, 2*dim)
    b1 = jnp.concatenate([b1c, b1s], axis=1)                            # (1, 2*dim)

    # Separation layer 2 + folded aux classifier column -> cs = [t | c | t_logit].
    wa_fold = params["w2s"] @ params["wa"]                              # (dim, 1)
    w2_ext = jnp.zeros((d2, 128), f32)
    w2_ext = w2_ext.at[:dim, dim:d2].set(params["w2c"])                 # h_c -> c_feature
    w2_ext = w2_ext.at[dim:, :dim].set(params["w2s"])                   # h_s -> t_feature
    w2_ext = w2_ext.at[dim:, d2:d2 + 1].set(wa_fold)                    # h_s -> t_logit

    # Fused recalibration + predictionMLP layer 1 (input [t | c]; t rows zero).
    wr_f, br = _fold_bn(params["wr"], params["bn_r"])
    wp1_f, bp = _fold_bn(params["wp1"], params["bn_p"])
    wpr_pad = jnp.zeros((d2, d2), f32)
    wpr_pad = wpr_pad.at[dim:, :dim].set(wr_f)                          # c -> recal
    wpr_pad = wpr_pad.at[dim:, dim:].set(wp1_f)                         # c -> hp
    b3 = jnp.concatenate([br, bp], axis=1)                              # (1, 2*dim)

    # Fused predictionMLP layer 2 + pre_classifier (input [recal+t | hp]).
    wfuse = jnp.zeros((d2, proj + dim), f32)
    wfuse = wfuse.at[:dim, proj:].set(params["wpre"])                   # recal+t -> pre_pool
    wfuse = wfuse.at[dim:, :proj].set(params["wp2"])                    # hp -> c_feature_proj

    # Consolidated weight slab (128-aligned column offsets).
    wrest = jnp.zeros((d2, 256 + proj + dim), f32)                      # (64, 544)
    wrest = wrest.at[:, 0:128].set(w2_ext)
    wrest = wrest.at[:, 128:128 + d2].set(wpr_pad)
    wrest = wrest.at[:, 256:256 + proj + dim].set(wfuse)

    # Consolidated f32 bias / scalar slab (one item per sublane row).
    fslab = jnp.zeros((8, 128), f32)
    fslab = fslab.at[0, 0:d2].set(b1[0])
    fslab = fslab.at[1, 0:d2].set(b3[0])
    fslab = fslab.at[2, 0:dim].set(params["bpre"][0])
    fslab = fslab.at[3, 0:dim].set(params["wc"][:, 0])
    fslab = fslab.at[4, 0].set(params["ba"][0, 0])
    fslab = fslab.at[4, 1].set(params["bc"][0, 0])

    return {"w1": w1.astype(jnp.bfloat16),
            "wrest": wrest.astype(jnp.bfloat16),
            "fslab": fslab,
            "dim": dim, "proj": proj}


def detector_forward(pooler, packed):
    """Pallas-backed head. pooler: (B, 768) f32.
    Returns (output, t_output, t_feature, c_feature, c_feature_proj)."""
    B = pooler.shape[0]
    dim, proj = packed["dim"], packed["proj"]
    d2 = 2 * dim
    slab_w = proj + 128                                                 # lane-dense output

    vmem = pl.BlockSpec(memory_space=pltpu.MemorySpace.VMEM)
    args = (pooler, packed["w1"], packed["wrest"], packed["fslab"])

    flops = 2 * B * (768 * d2 + d2 * 128 + d2 * d2 + d2 * (proj + dim)) + 16 * B * slab_w
    bytes_accessed = sum(int(a.size) * a.dtype.itemsize for a in args) + B * slab_w * 4

    slab = pl.pallas_call(
        functools.partial(_detector_kernel, dim=dim, proj=proj),
        out_shape=jax.ShapeDtypeStruct((B, slab_w), jnp.float32),
        in_specs=[vmem] * len(args),
        out_specs=vmem,
        cost_estimate=pl.CostEstimate(flops=flops,
                                      transcendentals=2 * B,
                                      bytes_accessed=bytes_accessed),
    )(*args)
    # NOTE: no batch grid on purpose at small B; only add a ("parallel",) batch
    # grid (blocks ~(256, .)) once B >~ 512 — see perf review.

    c_feature_proj = slab[:, 0:proj]
    t_feature = slab[:, proj:proj + dim]
    c_feature = slab[:, proj + dim:proj + d2]
    output = slab[:, proj + d2:proj + d2 + 1]
    t_output = slab[:, proj + d2 + 1:proj + d2 + 2]
    return output, t_output, t_feature, c_feature, c_feature_proj


# ----------------------------------------------------------------------------
# Pure-JAX f32 reference (mirrors the PyTorch module, eval mode) + params
# ----------------------------------------------------------------------------
def _bn_eval(x, bn):
    gamma, beta, mean, var = bn[0], bn[1], bn[2], bn[3]
    return gamma * (x - mean) * jax.lax.rsqrt(var + _BN_EPS) + beta


def detector_reference(pooler, params):
    c = jnp.maximum(_bn_eval(jnp.dot(pooler, params["w1c"]), params["bn_c"]), 0.0)
    c_feature = jnp.dot(c, params["w2c"])
    s = jnp.maximum(_bn_eval(jnp.dot(pooler, params["w1s"]), params["bn_s"]), 0.0)
    t_feature = jnp.dot(s, params["w2s"])
    p = jnp.maximum(_bn_eval(jnp.dot(c_feature, params["wp1"]), params["bn_p"]), 0.0)
    c_feature_proj = jnp.dot(p, params["wp2"])
    t_logit = jnp.dot(t_feature, params["wa"]) + params["ba"]
    r = jnp.maximum(_bn_eval(jnp.dot(c_feature, params["wr"]), params["bn_r"]), 0.0)
    pool = r + t_feature
    pool = jnp.maximum(jnp.dot(pool, params["wpre"]) + params["bpre"], 0.0)
    logit = jnp.dot(pool, params["wc"]) + params["bc"]
    return (jax.nn.sigmoid(logit), jax.nn.sigmoid(t_logit),
            t_feature, c_feature, c_feature_proj)


def init_params(key, dim=32, hidden=768, proj=256):
    ks = jax.random.split(key, 16)

    def lin(k, i, o):
        return jax.random.normal(k, (i, o), jnp.float32) * 0.02

    def bn(k, d):
        kg, kb, km, kv = jax.random.split(k, 4)
        gamma = 1.0 + 0.1 * jax.random.normal(kg, (d,), jnp.float32)
        beta = 0.1 * jax.random.normal(kb, (d,), jnp.float32)
        mean = 0.1 * jax.random.normal(km, (d,), jnp.float32)
        var = jax.random.uniform(kv, (d,), jnp.float32, 0.5, 1.5)
        return jnp.stack([gamma, beta, mean, var], axis=0)              # (4, d)

    return {
        "w1c": lin(ks[0], hidden, dim), "bn_c": bn(ks[1], dim), "w2c": lin(ks[2], dim, dim),
        "w1s": lin(ks[3], hidden, dim), "bn_s": bn(ks[4], dim), "w2s": lin(ks[5], dim, dim),
        "wp1": lin(ks[6], dim, dim), "bn_p": bn(ks[7], dim), "wp2": lin(ks[8], dim, proj),
        "wr": lin(ks[9], dim, dim), "bn_r": bn(ks[10], dim),
        "wa": lin(ks[11], dim, 1), "ba": jnp.zeros((1, 1), jnp.float32),
        "wpre": lin(ks[12], dim, dim),
        "bpre": 0.02 * jax.random.normal(ks[13], (1, dim), jnp.float32),
        "wc": lin(ks[14], dim, 1), "bc": jnp.zeros((1, 1), jnp.float32),
    }


if __name__ == "__main__":
    B, SEQ, HIDDEN, DIM, PROJ, VOCAB = 8, 8, 768, 32, 256, 100
    key = jax.random.PRNGKey(0)
    k_ids, k_emb, k_par = jax.random.split(key, 3)

    input_ids = jax.random.randint(k_ids, (B, SEQ), 0, VOCAB, dtype=jnp.int32)
    attention_mask = jnp.ones((B, SEQ), jnp.int32)
    token_type_ids = jnp.zeros((B, SEQ), jnp.int32)

    # TODO(synk): roberta-base encoder (self.l1) is not reimplemented; a
    # deterministic embedding lookup of the first ([CLS]) token stands in for
    # `hidden_state[:, 0]` to produce the 768-d pooler fed to the Pallas head.
    emb_table = jax.random.normal(k_emb, (VOCAB, HIDDEN), jnp.float32) * 0.02
    pooler = emb_table[input_ids[:, 0]]                                 # (B, 768)

    params = init_params(k_par, dim=DIM, hidden=HIDDEN, proj=PROJ)
    # Executed once at setup (eager); the per-step path is a single pallas_call.
    packed = jax.tree_util.tree_map(
        lambda x: jax.block_until_ready(x) if isinstance(x, jax.Array) else x,
        pack_params(params))

    outs = jax.block_until_ready(detector_forward(pooler, packed))
    output, t_output, t_feature, c_feature, c_feature_proj = outs

    # Shape / range sanity.
    assert output.shape == (B, 1) and t_output.shape == (B, 1)
    assert t_feature.shape == (B, DIM) and c_feature.shape == (B, DIM)
    assert c_feature_proj.shape == (B, PROJ)
    assert bool(jnp.all((output >= 0) & (output <= 1)))
    assert bool(jnp.all((t_output >= 0) & (t_output <= 1)))

    # Numerical check vs the f32 unfused reference (bf16 MXU operands -> loose tol).
    refs = detector_reference(pooler, params)
    for got, ref in zip(outs, refs):
        assert bool(jnp.all(jnp.isfinite(got)))
        assert float(jnp.max(jnp.abs(got - ref))) < 2e-2

    print("KERNEL_OK")
</pallas_src>

<mosaic_0001>
module attributes {stable_mosaic.version = 11 : i64} {
  func.func @_detector_kernel(%arg0: memref<8x768xf32, #tpu.memory_space<vmem>>, %arg1: memref<768x64xbf16, #tpu.memory_space<vmem>>, %arg2: memref<64x544xbf16, #tpu.memory_space<vmem>>, %arg3: memref<8x128xf32, #tpu.memory_space<vmem>>, %arg4: memref<8x384xf32, #tpu.memory_space<vmem>>) attributes {dimension_semantics = [], scalar_prefetch = 0 : i64, scratch_operands = 0 : i64, tpu.core_type = #tpu.core_type<tc>} {
    %c0 = arith.constant 0 : index
    %c0_0 = arith.constant 0 : index
    %0 = vector.load %arg3[%c0, %c0_0] : memref<8x128xf32, #tpu.memory_space<vmem>>, vector<1x64xf32>
    %c1 = arith.constant 1 : index
    %c0_1 = arith.constant 0 : index
    %1 = vector.load %arg3[%c1, %c0_1] : memref<8x128xf32, #tpu.memory_space<vmem>>, vector<1x64xf32>
    %c2 = arith.constant 2 : index
    %c0_2 = arith.constant 0 : index
    %2 = vector.load %arg3[%c2, %c0_2] : memref<8x128xf32, #tpu.memory_space<vmem>>, vector<1x32xf32>
    %c3 = arith.constant 3 : index
    %c0_3 = arith.constant 0 : index
    %3 = vector.load %arg3[%c3, %c0_3] : memref<8x128xf32, #tpu.memory_space<vmem>>, vector<1x32xf32>
    %c4 = arith.constant 4 : index
    %c0_4 = arith.constant 0 : index
    %4 = vector.load %arg3[%c4, %c0_4] : memref<8x128xf32, #tpu.memory_space<vmem>>, vector<1x1xf32>
    %c4_5 = arith.constant 4 : index
    %c1_6 = arith.constant 1 : index
    %5 = vector.load %arg3[%c4_5, %c1_6] : memref<8x128xf32, #tpu.memory_space<vmem>>, vector<1x1xf32>
    %c0_7 = arith.constant 0 : index
    %c0_8 = arith.constant 0 : index
    %6 = vector.load %arg0[%c0_7, %c0_8] : memref<8x768xf32, #tpu.memory_space<vmem>>, vector<8x768xf32>
    %7 = arith.truncf %6 : vector<8x768xf32> to vector<8x768xbf16>
    %c0_9 = arith.constant 0 : index
    %c0_10 = arith.constant 0 : index
    %8 = vector.load %arg1[%c0_9, %c0_10] : memref<768x64xbf16, #tpu.memory_space<vmem>>, vector<768x64xbf16>
    %cst = arith.constant dense<0.000000e+00> : vector<8x64xf32>
    %9 = tpu.matmul %7, %8, %cst {dimension_numbers = #tpu.dot_dimension_numbers<[1], [0], [0], [1], [0, 0, 1, 1], [], []>} : vector<8x768xbf16>, vector<768x64xbf16>, vector<8x64xf32> -> vector<8x64xf32>
    %10 = vector.broadcast %0 : vector<1x64xf32> to vector<8x64xf32>
    %11 = arith.addf %9, %10 : vector<8x64xf32>
    %cst_11 = arith.constant 0.000000e+00 : f32
    %12 = vector.broadcast %cst_11 : f32 to vector<8x64xf32>
    %13 = arith.maximumf %11, %12 : vector<8x64xf32>
    %14 = arith.truncf %13 : vector<8x64xf32> to vector<8x64xbf16>
    %c0_12 = arith.constant 0 : index
    %c0_13 = arith.constant 0 : index
    %15 = vector.load %arg2[%c0_12, %c0_13] : memref<64x544xbf16, #tpu.memory_space<vmem>>, vector<64x128xbf16>
    %cst_14 = arith.constant dense<0.000000e+00> : vector<8x128xf32>
    %16 = tpu.matmul %14, %15, %cst_14 {dimension_numbers = #tpu.dot_dimension_numbers<[1], [0], [0], [1], [0, 0, 1, 1], [], []>} : vector<8x64xbf16>, vector<64x128xbf16>, vector<8x128xf32> -> vector<8x128xf32>
    %17 = vector.extract_strided_slice %16 {offsets = [0, 0], sizes = [8, 64], strides = [1, 1]} : vector<8x128xf32> to vector<8x64xf32>
    %18 = vector.extract_strided_slice %16 {offsets = [0, 64], sizes = [8, 1], strides = [1, 1]} : vector<8x128xf32> to vector<8x1xf32>
    %19 = vector.broadcast %4 : vector<1x1xf32> to vector<8x1xf32>
    %20 = arith.addf %18, %19 : vector<8x1xf32>
    %21 = arith.truncf %17 : vector<8x64xf32> to vector<8x64xbf16>
    %c0_15 = arith.constant 0 : index
    %c128 = arith.constant 128 : index
    %22 = vector.load %arg2[%c0_15, %c128] : memref<64x544xbf16, #tpu.memory_space<vmem>>, vector<64x64xbf16>
    %cst_16 = arith.constant dense<0.000000e+00> : vector<8x64xf32>
    %23 = tpu.matmul %21, %22, %cst_16 {dimension_numbers = #tpu.dot_dimension_numbers<[1], [0], [0], [1], [0, 0, 1, 1], [], []>} : vector<8x64xbf16>, vector<64x64xbf16>, vector<8x64xf32> -> vector<8x64xf32>
    %24 = vector.broadcast %1 : vector<1x64xf32> to vector<8x64xf32>
    %25 = arith.addf %23, %24 : vector<8x64xf32>
    %cst_17 = arith.constant 0.000000e+00 : f32
    %26 = vector.broadcast %cst_17 : f32 to vector<8x64xf32>
    %27 = arith.maximumf %25, %26 : vector<8x64xf32>
    %28 = tpu.iota {dimensions = array<i32: 1>} : vector<8x64xi32>
    %c32_i32 = arith.constant 32 : i32
    %29 = vector.broadcast %c32_i32 : i32 to vector<8x64xi32>
    %30 = arith.cmpi slt, %28, %29 : vector<8x64xi32>
    %cst_18 = arith.constant 0.000000e+00 : f32
    %31 = vector.broadcast %cst_18 : f32 to vector<8x64xf32>
    %32 = arith.select %30, %17, %31 : vector<8x64xi1>, vector<8x64xf32>
    %33 = arith.addf %27, %32 : vector<8x64xf32>
    %34 = arith.truncf %33 : vector<8x64xf32> to vector<8x64xbf16>
    %c0_19 = arith.constant 0 : index
    %c256 = arith.constant 256 : index
    %35 = vector.load %arg2[%c0_19, %c256] : memref<64x544xbf16, #tpu.memory_space<vmem>>, vector<64x288xbf16>
    %cst_20 = arith.constant dense<0.000000e+00> : vector<8x288xf32>
    %36 = tpu.matmul %34, %35, %cst_20 {dimension_numbers = #tpu.dot_dimension_numbers<[1], [0], [0], [1], [0, 0, 1, 1], [], []>} : vector<8x64xbf16>, vector<64x288xbf16>, vector<8x288xf32> -> vector<8x288xf32>
    %37 = vector.extract_strided_slice %36 {offsets = [0, 256], sizes = [8, 32], strides = [1, 1]} : vector<8x288xf32> to vector<8x32xf32>
    %38 = vector.broadcast %2 : vector<1x32xf32> to vector<8x32xf32>
    %39 = arith.addf %37, %38 : vector<8x32xf32>
    %cst_21 = arith.constant 0.000000e+00 : f32
    %40 = vector.broadcast %cst_21 : f32 to vector<8x32xf32>
    %41 = arith.maximumf %39, %40 : vector<8x32xf32>
    %42 = vector.broadcast %3 : vector<1x32xf32> to vector<8x32xf32>
    %43 = arith.mulf %41, %42 : vector<8x32xf32>
    %cst_22 = arith.constant dense<0.000000e+00> : vector<8xf32>
    %44 = vector.multi_reduction <add>, %43, %cst_22 [1] : vector<8x32xf32> to vector<8xf32>
    %45 = vector.shape_cast %44 : vector<8xf32> to vector<8x1xf32>
    %46 = vector.broadcast %5 : vector<1x1xf32> to vector<8x1xf32>
    %47 = arith.addf %45, %46 : vector<8x1xf32>
    %48 = tpu.concatenate %47, %20 in 1 : vector<8x1xf32>, vector<8x1xf32> -> vector<8x2xf32>
    %49 = arith.negf %48 : vector<8x2xf32>
    %50 = math.exp %49 : vector<8x2xf32>
    %cst_23 = arith.constant 1.000000e+00 : f32
    %51 = vector.broadcast %cst_23 : f32 to vector<8x2xf32>
    %52 = arith.addf %51, %50 : vector<8x2xf32>
    %53 = arith.divf %51, %52 : vector<8x2xf32>
    %54 = vector.extract_strided_slice %36 {offsets = [0, 0], sizes = [8, 256], strides = [1, 1]} : vector<8x288xf32> to vector<8x256xf32>
    %c0_24 = arith.constant 0 : index
    %c0_25 = arith.constant 0 : index
    %55 = vector.load %arg4[%c0_24, %c0_25] : memref<8x384xf32, #tpu.memory_space<vmem>>, vector<8x256xf32>
    tpu.vector_store %arg4[%c0_24, %c0_25], %54 {strides = array<i32>} : memref<8x384xf32, #tpu.memory_space<vmem>>, vector<8x256xf32>,
    %cst_26 = arith.constant 0.000000e+00 : f32
    %56 = vector.broadcast %cst_26 : f32 to vector<8x62xf32>
    %57 = tpu.concatenate %17, %53, %56 in 1 : vector<8x64xf32>, vector<8x2xf32>, vector<8x62xf32> -> vector<8x128xf32>
    %c0_27 = arith.constant 0 : index
    %c256_28 = arith.constant 256 : index
    %58 = vector.load %arg4[%c0_27, %c256_28] : memref<8x384xf32, #tpu.memory_space<vmem>>, vector<8x128xf32>
    tpu.vector_store %arg4[%c0_27, %c256_28], %57 {strides = array<i32>} : memref<8x384xf32, #tpu.memory_space<vmem>>, vector<8x128xf32>,
    return
  }
}

</mosaic_0001>

<llo_original>
// kernel: tpu_custom_call.1
$region0: #{tpu_custom_call.1}
  #allocation0 [shape = 'u32[]', space=smem, size = 0x4, offset = 0x4, fixed_abs, tag = 'smem constant byte address 0x4 - core index']
  #allocation1 [shape = 'u32[144,128]{1,0:T(1,128)}', space=vmem, size = 0x12000, scoped, tag = 'internal scratch']
  %s0 = inlined_call_operand.vmem [shape: f32[8,768], index: 0, kind: input, shape index: {}]
  %s1 = inlined_call_operand.vmem [shape: bf16[768,64], index: 1, kind: input, shape index: {}]
  %s2 = inlined_call_operand.vmem [shape: bf16[64,544], index: 2, kind: input, shape index: {}]
  %s3 = inlined_call_operand.vmem [shape: f32[8,128], index: 3, kind: input, shape index: {}]
  %s4 = inlined_call_operand.hbm [shape: f32[8,384], index: 4, kind: output, shape index: {}]
  %s5 = sld [smem:[#allocation0]]
  $region26: #{tpu_custom_call.1} parent=0
    _
  %s7 = ssub.s32 1, %s5
  %s8 = scalar_select 0, %s7, %s5
  $region1: #{tpu_custom_call.1} parent=0
    #allocation2 [shape = 'u8[12288]{0}', space=vmem, size = 0x3000, scoped, tag = 'output window, operand 0, single buffered']
    #allocation3 [shape = 's32[1]{0}', space=sflag, size = 0x4, scoped, tag = 'scoped memory for tpu_custom_call.1']
    %9 = vsyncpa [#allocation3], 0
    // Predicated region
    $region2: #{tpu_custom_call.1} parent=1 // pred_check
      _
    $region3: #{tpu_custom_call.1} parent=1 // pred_check_branch
      %11 = sbr.rel (0) target = $region5
    $region4: #{tpu_custom_call.1} parent=1 // pred_region
      _
    $region5: #{tpu_custom_call.1} parent=1 // pred_fallthru
      _
    // Predicated region
    $region6: #{tpu_custom_call.1} parent=1 // pred_check
      _
    $region7: #{tpu_custom_call.1} parent=1 // pred_check_branch
      %13 = sbr.rel (0) target = $region9
    $region8: #{tpu_custom_call.1} parent=1 // pred_region
      _
    $region9: #{tpu_custom_call.1} parent=1 // pred_fallthru
      _
    // Predicated region
    $region10: #{tpu_custom_call.1} parent=1 // pred_check
      _
    $region11: #{tpu_custom_call.1} parent=1 // pred_check_branch
      %15 = sbr.rel (0) target = $region13
    $region12: #{tpu_custom_call.1} parent=1 // pred_region
      _
    $region13: #{tpu_custom_call.1} parent=1 // pred_fallthru
      _
    // Predicated region
    $region14: #{tpu_custom_call.1} parent=1 // pred_check
      _
    $region15: #{tpu_custom_call.1} parent=1 // pred_check_branch
      %17 = sbr.rel (0) target = $region17
    $region16: #{tpu_custom_call.1} parent=1 // pred_region
      _
    $region17: #{tpu_custom_call.1} parent=1 // pred_fallthru
      _
    %v19 = vld [vmem:[%s3] sm:$0x1]
    %v20 = vld [vmem:[%s3 + $0x1] sm:$0x1]
    %v21 = vld [vmem:[%s3 + $0x2] sm:$0x1]
    %v22 = vld [vmem:[%s3 + $0x3] sm:$0x1]
    %v23 = vld [vmem:[%s3 + $0x4] sm:$0x1]
    %v24 = vld [vmem:[%s0] sm:$0xff]
    %v25 = vld [vmem:[%s0 + $0x8] sm:$0xff]
    %v26 = vld [vmem:[%s0 + $0x10] sm:$0xff]
    %v27 = vld [vmem:[%s0 + $0x18] sm:$0xff]
    %v28 = vld [vmem:[%s0 + $0x20] sm:$0xff]
    %v29 = vld [vmem:[%s0 + $0x28] sm:$0xff]
    %v30 = vpack.c.bf16 %v24, %v24
    %v31 = vpack.c.bf16 %v25, %v25
    %v32 = vpack.c.bf16 %v26, %v26
    %v33 = vpack.c.bf16 %v27, %v27
    %v34 = vpack.c.bf16 %v28, %v28
    %v35 = vpack.c.bf16 %v29, %v29
    %v36 = vld [vmem:[%s1] sm:$0xf]
    %v37 = vld [vmem:[%s1 + $0x4] sm:$0xf]
    %v38 = vld [vmem:[%s1 + $0x8] sm:$0xf]
    %v39 = vld [vmem:[%s1 + $0xc] sm:$0xf]
    %v40 = vld [vmem:[%s1 + $0x10] sm:$0xf]
    %v41 = vld [vmem:[%s1 + $0x14] sm:$0xf]
    %v42 = vld [vmem:[%s1 + $0x18] sm:$0xf]
    %v43 = vld [vmem:[%s1 + $0x1c] sm:$0xf]
    %v44 = vld [vmem:[%s1 + $0x20] sm:$0xf]
    %v45 = vld [vmem:[%s1 + $0x24] sm:$0xf]
    %v46 = vld [vmem:[%s1 + $0x28] sm:$0xf]
    %v47 = vld [vmem:[%s1 + $0x2c] sm:$0xf]
    %v48 = vld [vmem:[%s1 + $0x30] sm:$0xf]
    %v49 = vld [vmem:[%s1 + $0x34] sm:$0xf]
    %v50 = vld [vmem:[%s1 + $0x38] sm:$0xf]
    %v51 = vld [vmem:[%s1 + $0x3c] sm:$0xf]
    %v52 = vld [vmem:[%s1 + $0x40] sm:$0xf]
    %v53 = vld [vmem:[%s1 + $0x44] sm:$0xf]
    %v54 = vld [vmem:[%s1 + $0x48] sm:$0xf]
    %v55 = vld [vmem:[%s1 + $0x4c] sm:$0xf]
    %v56 = vld [vmem:[%s1 + $0x50] sm:$0xf]
    %v57 = vld [vmem:[%s1 + $0x54] sm:$0xf]
    %v58 = vld [vmem:[%s1 + $0x58] sm:$0xf]
    %v59 = vld [vmem:[%s1 + $0x5c] sm:$0xf]
    %v60 = vld [vmem:[%s1 + $0x60] sm:$0xf]
    %v61 = vld [vmem:[%s1 + $0x64] sm:$0xf]
    %v62 = vld [vmem:[%s1 + $0x68] sm:$0xf]
    %v63 = vld [vmem:[%s1 + $0x6c] sm:$0xf]
    %v64 = vld [vmem:[%s1 + $0x70] sm:$0xf]
    %v65 = vld [vmem:[%s1 + $0x74] sm:$0xf]
    %v66 = vld [vmem:[%s1 + $0x78] sm:$0xf]
    %v67 = vld [vmem:[%s1 + $0x7c] sm:$0xf]
    %v68 = vld [vmem:[%s1 + $0x80] sm:$0xf]
    %v69 = vld [vmem:[%s1 + $0x84] sm:$0xf]
    %v70 = vld [vmem:[%s1 + $0x88] sm:$0xf]
    %v71 = vld [vmem:[%s1 + $0x8c] sm:$0xf]
    %v72 = vld [vmem:[%s1 + $0x90] sm:$0xf]
    %v73 = vld [vmem:[%s1 + $0x94] sm:$0xf]
    %v74 = vld [vmem:[%s1 + $0x98] sm:$0xf]
    %v75 = vld [vmem:[%s1 + $0x9c] sm:$0xf]
    %v76 = vld [vmem:[%s1 + $0xa0] sm:$0xf]
    %v77 = vld [vmem:[%s1 + $0xa4] sm:$0xf]
    %v78 = vld [vmem:[%s1 + $0xa8] sm:$0xf]
    %v79 = vld [vmem:[%s1 + $0xac] sm:$0xf]
    %v80 = vld [vmem:[%s1 + $0xb0] sm:$0xf]
    %v81 = vld [vmem:[%s1 + $0xb4] sm:$0xf]
    %v82 = vld [vmem:[%s1 + $0xb8] sm:$0xf]
    %v83 = vld [vmem:[%s1 + $0xbc] sm:$0xf]
    %v84 = vld [vmem:[%s1 + $0xc0] sm:$0xf]
    %v85 = vld [vmem:[%s1 + $0xc4] sm:$0xf]
    %v86 = vld [vmem:[%s1 + $0xc8] sm:$0xf]
    %v87 = vld [vmem:[%s1 + $0xcc] sm:$0xf]
    %v88 = vld [vmem:[%s1 + $0xd0] sm:$0xf]
    %v89 = vld [vmem:[%s1 + $0xd4] sm:$0xf]
    %v90 = vld [vmem:[%s1 + $0xd8] sm:$0xf]
    %v91 = vld [vmem:[%s1 + $0xdc] sm:$0xf]
    %v92 = vld [vmem:[%s1 + $0xe0] sm:$0xf]
    %v93 = vld [vmem:[%s1 + $0xe4] sm:$0xf]
    %v94 = vld [vmem:[%s1 + $0xe8] sm:$0xf]
    %v95 = vld [vmem:[%s1 + $0xec] sm:$0xf]
    %v96 = vld [vmem:[%s1 + $0xf0] sm:$0xf]
    %v97 = vld [vmem:[%s1 + $0xf4] sm:$0xf]
    %v98 = vld [vmem:[%s1 + $0xf8] sm:$0xf]
    %v99 = vld [vmem:[%s1 + $0xfc] sm:$0xf]
    %v100 = vld [vmem:[%s1 + $0x100] sm:$0xf]
    %v101 = vld [vmem:[%s1 + $0x104] sm:$0xf]
    %v102 = vld [vmem:[%s1 + $0x108] sm:$0xf]
    %v103 = vld [vmem:[%s1 + $0x10c] sm:$0xf]
    %v104 = vld [vmem:[%s1 + $0x110] sm:$0xf]
    %v105 = vld [vmem:[%s1 + $0x114] sm:$0xf]
    %v106 = vld [vmem:[%s1 + $0x118] sm:$0xf]
    %v107 = vld [vmem:[%s1 + $0x11c] sm:$0xf]
    %v108 = vld [vmem:[%s1 + $0x120] sm:$0xf]
    %v109 = vld [vmem:[%s1 + $0x124] sm:$0xf]
    %v110 = vld [vmem:[%s1 + $0x128] sm:$0xf]
    %v111 = vld [vmem:[%s1 + $0x12c] sm:$0xf]
    %v112 = vld [vmem:[%s1 + $0x130] sm:$0xf]
    %v113 = vld [vmem:[%s1 + $0x134] sm:$0xf]
    %v114 = vld [vmem:[%s1 + $0x138] sm:$0xf]
    %v115 = vld [vmem:[%s1 + $0x13c] sm:$0xf]
    %v116 = vld [vmem:[%s1 + $0x140] sm:$0xf]
    %v117 = vld [vmem:[%s1 + $0x144] sm:$0xf]
    %v118 = vld [vmem:[%s1 + $0x148] sm:$0xf]
    %v119 = vld [vmem:[%s1 + $0x14c] sm:$0xf]
    %v120 = vld [vmem:[%s1 + $0x150] sm:$0xf]
    %v121 = vld [vmem:[%s1 + $0x154] sm:$0xf]
    %v122 = vld [vmem:[%s1 + $0x158] sm:$0xf]
    %v123 = vld [vmem:[%s1 + $0x15c] sm:$0xf]
    %v124 = vld [vmem:[%s1 + $0x160] sm:$0xf]
    %v125 = vld [vmem:[%s1 + $0x164] sm:$0xf]
    %v126 = vld [vmem:[%s1 + $0x168] sm:$0xf]
    %v127 = vld [vmem:[%s1 + $0x16c] sm:$0xf]
    %v128 = vld [vmem:[%s1 + $0x170] sm:$0xf]
    %v129 = vld [vmem:[%s1 + $0x174] sm:$0xf]
    %v130 = vld [vmem:[%s1 + $0x178] sm:$0xf]
    %v131 = vld [vmem:[%s1 + $0x17c] sm:$0xf]
    %v132 = vlaneseq
    %v133 = vshrl.u32 %v132, 7
    %v134 = vsub.s32 0, %v133
    %v135 = vrot.slane %v19, %v134
    %v232 = vunpack.c.l.b16 %v36
    %v233 = vunpack.c.l.b16 %v37
    %v234 = vunpack.c.l.b16 %v38
    %v235 = vunpack.c.l.b16 %v39
    %v236 = vunpack.c.l.b16 %v40
    %v237 = vunpack.c.l.b16 %v41
    %v238 = vunpack.c.l.b16 %v42
    %v239 = vunpack.c.l.b16 %v43
    %v240 = vunpack.c.l.b16 %v44
    %v241 = vunpack.c.l.b16 %v45
    %v242 = vunpack.c.l.b16 %v46
    %v243 = vunpack.c.l.b16 %v47
    %v244 = vunpack.c.l.b16 %v48
    %v245 = vunpack.c.l.b16 %v49
    %v246 = vunpack.c.l.b16 %v50
    %v247 = vunpack.c.l.b16 %v51
    %v248 = vunpack.c.l.b16 %v52
    %v249 = vunpack.c.l.b16 %v53
    %v250 = vunpack.c.l.b16 %v54
    %v251 = vunpack.c.l.b16 %v55
    %v252 = vunpack.c.l.b16 %v56
    %v253 = vunpack.c.l.b16 %v57
    %v254 = vunpack.c.l.b16 %v58
    %v255 = vunpack.c.l.b16 %v59
    %v256 = vunpack.c.l.b16 %v60
    %v257 = vunpack.c.l.b16 %v61
    %v258 = vunpack.c.l.b16 %v62
    %v259 = vunpack.c.l.b16 %v63
    %v260 = vunpack.c.l.b16 %v64
    %v261 = vunpack.c.l.b16 %v65
    %v262 = vunpack.c.l.b16 %v66
    %v263 = vunpack.c.l.b16 %v67
    %v264 = vunpack.c.l.b16 %v68
    %v265 = vunpack.c.l.b16 %v69
    %v266 = vunpack.c.l.b16 %v70
    %v267 = vunpack.c.l.b16 %v71
    %v268 = vunpack.c.l.b16 %v72
    %v269 = vunpack.c.l.b16 %v73
    %v270 = vunpack.c.l.b16 %v74
    %v271 = vunpack.c.l.b16 %v75
    %v272 = vunpack.c.l.b16 %v76
    %v273 = vunpack.c.l.b16 %v77
    %v274 = vunpack.c.l.b16 %v78
    %v275 = vunpack.c.l.b16 %v79
    %v276 = vunpack.c.l.b16 %v80
    %v277 = vunpack.c.l.b16 %v81
    %v278 = vunpack.c.l.b16 %v82
    %v279 = vunpack.c.l.b16 %v83
    %v280 = vunpack.c.l.b16 %v84
    %v281 = vunpack.c.l.b16 %v85
    %v282 = vunpack.c.l.b16 %v86
    %v283 = vunpack.c.l.b16 %v87
    %v284 = vunpack.c.l.b16 %v88
    %v285 = vunpack.c.l.b16 %v89
    %v286 = vunpack.c.l.b16 %v90
    %v287 = vunpack.c.l.b16 %v91
    %v288 = vunpack.c.l.b16 %v92
    %v289 = vunpack.c.l.b16 %v93
    %v290 = vunpack.c.l.b16 %v94
    %v291 = vunpack.c.l.b16 %v95
    %v292 = vunpack.c.l.b16 %v96
    %v293 = vunpack.c.l.b16 %v97
    %v294 = vunpack.c.l.b16 %v98
    %v295 = vunpack.c.l.b16 %v99
    %v296 = vunpack.c.l.b16 %v100
    %v297 = vunpack.c.l.b16 %v101
    %v298 = vunpack.c.l.b16 %v102
    %v299 = vunpack.c.l.b16 %v103
    %v300 = vunpack.c.l.b16 %v104
    %v301 = vunpack.c.l.b16 %v105
    %v302 = vunpack.c.l.b16 %v106
    %v303 = vunpack.c.l.b16 %v107
    %v304 = vunpack.c.l.b16 %v108
    %v305 = vunpack.c.l.b16 %v109
    %v306 = vunpack.c.l.b16 %v110
    %v307 = vunpack.c.l.b16 %v111
    %v308 = vunpack.c.l.b16 %v112
    %v309 = vunpack.c.l.b16 %v113
    %v310 = vunpack.c.l.b16 %v114
    %v311 = vunpack.c.l.b16 %v115
    %v312 = vunpack.c.l.b16 %v116
    %v313 = vunpack.c.l.b16 %v117
    %v314 = vunpack.c.l.b16 %v118
    %v315 = vunpack.c.l.b16 %v119
    %v316 = vunpack.c.l.b16 %v120
    %v317 = vunpack.c.l.b16 %v121
    %v318 = vunpack.c.l.b16 %v122
    %v319 = vunpack.c.l.b16 %v123
    %v320 = vunpack.c.l.b16 %v124
    %v321 = vunpack.c.l.b16 %v125
    %v322 = vunpack.c.l.b16 %v126
    %v323 = vunpack.c.l.b16 %v127
    %v324 = vunpack.c.l.b16 %v128
    %v325 = vunpack.c.l.b16 %v129
    %v326 = vunpack.c.l.b16 %v130
    %v327 = vunpack.c.l.b16 %v131
    %v328 = vpack.c.b16 %v233, %v232
    %v329 = vpack.c.b16 %v235, %v234
    %v330 = vpack.c.b16 %v237, %v236
    %v331 = vpack.c.b16 %v239, %v238
    %v332 = vpack.c.b16 %v241, %v240
    %v333 = vpack.c.b16 %v243, %v242
    %v334 = vpack.c.b16 %v245, %v244
    %v335 = vpack.c.b16 %v247, %v246
    %v336 = vpack.c.b16 %v249, %v248
    %v337 = vpack.c.b16 %v251, %v250
    %v338 = vpack.c.b16 %v253, %v252
    %v339 = vpack.c.b16 %v255, %v254
    %v340 = vpack.c.b16 %v257, %v256
    %v341 = vpack.c.b16 %v259, %v258
    %v342 = vpack.c.b16 %v261, %v260
    %v343 = vpack.c.b16 %v263, %v262
    %v344 = vpack.c.b16 %v265, %v264
    %v345 = vpack.c.b16 %v267, %v266
    %v346 = vpack.c.b16 %v269, %v268
    %v347 = vpack.c.b16 %v271, %v270
    %v348 = vpack.c.b16 %v273, %v272
    %v349 = vpack.c.b16 %v275, %v274
    %v350 = vpack.c.b16 %v277, %v276
    %v351 = vpack.c.b16 %v279, %v278
    %v352 = vpack.c.b16 %v281, %v280
    %v353 = vpack.c.b16 %v283, %v282
    %v354 = vpack.c.b16 %v285, %v284
    %v355 = vpack.c.b16 %v287, %v286
    %v356 = vpack.c.b16 %v289, %v288
    %v357 = vpack.c.b16 %v291, %v290
    %v358 = vpack.c.b16 %v293, %v292
    %v359 = vpack.c.b16 %v295, %v294
    %v360 = vpack.c.b16 %v297, %v296
    %v361 = vpack.c.b16 %v299, %v298
    %v362 = vpack.c.b16 %v301, %v300
    %v363 = vpack.c.b16 %v303, %v302
    %v364 = vpack.c.b16 %v305, %v304
    %v365 = vpack.c.b16 %v307, %v306
    %v366 = vpack.c.b16 %v309, %v308
    %v367 = vpack.c.b16 %v311, %v310
    %v368 = vpack.c.b16 %v313, %v312
    %v369 = vpack.c.b16 %v315, %v314
    %v370 = vpack.c.b16 %v317, %v316
    %v371 = vpack.c.b16 %v319, %v318
    %v372 = vpack.c.b16 %v321, %v320
    %v373 = vpack.c.b16 %v323, %v322
    %v374 = vpack.c.b16 %v325, %v324
    %v375 = vpack.c.b16 %v327, %v326
    %424 = vmatprep.subr.bf16.mxu0 0
    %425 = vmatpush1.bf16.msra.mxu0 %v335
    %426 = vmatprep.subr.bf16.mxu0 0
    %427 = vmatpush1.bf16.msra.mxu0 %v334
    %428 = vmatprep.subr.bf16.mxu0 0
    %429 = vmatpush1.bf16.msra.mxu0 %v333
    %430 = vmatprep.subr.bf16.mxu0 0
    %431 = vmatpush1.bf16.msra.mxu0 %v332
    %432 = vmatprep.subr.bf16.mxu0 0
    %433 = vmatpush1.bf16.msra.mxu0 %v331
    %434 = vmatprep.subr.bf16.mxu0 0
    %435 = vmatpush1.bf16.msra.mxu0 %v330
    %436 = vmatprep.subr.bf16.mxu0 0
    %437 = vmatpush1.bf16.msra.mxu0 %v329
    %438 = vmatprep.subr.bf16.mxu0 0
    %439 = vmatpush1.bf16.msra.mxu0 %v328
    %440 = vmatprep.subr.bf16.mxu0 0
    %441 = vmatpush2.bf16.msra.mxu0 %v343
    %442 = vmatprep.subr.bf16.mxu0 0
    %443 = vmatpush2.bf16.msra.mxu0 %v342
    %444 = vmatprep.subr.bf16.mxu0 0
    %445 = vmatpush2.bf16.msra.mxu0 %v341
    %446 = vmatprep.subr.bf16.mxu0 0
    %447 = vmatpush2.bf16.msra.mxu0 %v340
    %448 = vmatprep.subr.bf16.mxu0 0
    %449 = vmatpush2.bf16.msra.mxu0 %v339
    %450 = vmatprep.subr.bf16.mxu0 0
    %451 = vmatpush2.bf16.msra.mxu0 %v338
    %452 = vmatprep.subr.bf16.mxu0 0
    %453 = vmatpush2.bf16.msra.mxu0 %v337
    %454 = vmatprep.subr.bf16.mxu0 0
    %455 = vmatpush2.bf16.msra.mxu0 %v336
    %456 = vmatprep.mubr.bf16.mxu0 %v31
    %457 = vmatmul.mubr.bf16.gmra.mxu0 %v30
    %v458 = vpop.f32.mrf.mxu0
    %v459 = vadd.f32 %v135, %v458
    %v460 = vpop.f32.mrf.mxu0
    %v461 = vpop.f32.mrf.mxu0
    %v462 = vpop.f32.mrf.mxu0
    %463 = vdwg.mxu0
    %464 = vmatprep.subr.bf16.mxu0 0
    %465 = vmatpush1.bf16.msra.mxu0 %v351
    %466 = vmatprep.subr.bf16.mxu0 0
    %467 = vmatpush1.bf16.msra.mxu0 %v350
    %468 = vmatprep.subr.bf16.mxu0 0
    %469 = vmatpush1.bf16.msra.mxu0 %v349
    %470 = vmatprep.subr.bf16.mxu0 0
    %471 = vmatpush1.bf16.msra.mxu0 %v348
    %472 = vmatprep.subr.bf16.mxu0 0
    %473 = vmatpush1.bf16.msra.mxu0 %v347
    %474 = vmatprep.subr.bf16.mxu0 0
    %475 = vmatpush1.bf16.msra.mxu0 %v346
    %476 = vmatprep.subr.bf16.mxu0 0
    %477 = vmatpush1.bf16.msra.mxu0 %v345
    %478 = vmatprep.subr.bf16.mxu0 0
    %479 = vmatpush1.bf16.msra.mxu0 %v344
    %480 = vmatprep.subr.bf16.mxu0 0
    %481 = vmatpush2.bf16.msra.mxu0 %v359
    %482 = vmatprep.subr.bf16.mxu0 0
    %483 = vmatpush2.bf16.msra.mxu0 %v358
    %484 = vmatprep.subr.bf16.mxu0 0
    %485 = vmatpush2.bf16.msra.mxu0 %v357
    %486 = vmatprep.subr.bf16.mxu0 0
    %487 = vmatpush2.bf16.msra.mxu0 %v356
    %488 = vmatprep.subr.bf16.mxu0 0
    %489 = vmatpush2.bf16.msra.mxu0 %v355
    %490 = vmatprep.subr.bf16.mxu0 0
    %491 = vmatpush2.bf16.msra.mxu0 %v354
    %492 = vmatprep.subr.bf16.mxu0 0
    %493 = vmatpush2.bf16.msra.mxu0 %v353
    %494 = vmatprep.subr.bf16.mxu0 0
    %495 = vmatpush2.bf16.msra.mxu0 %v352
    %496 = vmatprep.mubr.bf16.mxu0 %v33
    %497 = vmatmul.mubr.bf16.gmra.mxu0 %v32
    %v498 = vpop.f32.mrf.mxu0
    %v499 = vadd.f32 %v459, %v498
    %v500 = vpop.f32.mrf.mxu0
    %v501 = vpop.f32.mrf.mxu0
    %v502 = vpop.f32.mrf.mxu0
    %503 = vdwg.mxu0
    %504 = vmatprep.subr.bf16.mxu0 0
    %505 = vmatpush1.bf16.msra.mxu0 %v367
    %506 = vmatprep.subr.bf16.mxu0 0
    %507 = vmatpush1.bf16.msra.mxu0 %v366
    %508 = vmatprep.subr.bf16.mxu0 0
    %509 = vmatpush1.bf16.msra.mxu0 %v365
    %510 = vmatprep.subr.bf16.mxu0 0
    %511 = vmatpush1.bf16.msra.mxu0 %v364
    %512 = vmatprep.subr.bf16.mxu0 0
    %513 = vmatpush1.bf16.msra.mxu0 %v363
    %514 = vmatprep.subr.bf16.mxu0 0
    %515 = vmatpush1.bf16.msra.mxu0 %v362
    %516 = vmatprep.subr.bf16.mxu0 0
    %517 = vmatpush1.bf16.msra.mxu0 %v361
    %518 = vmatprep.subr.bf16.mxu0 0
    %519 = vmatpush1.bf16.msra.mxu0 %v360
    %520 = vmatprep.subr.bf16.mxu0 0
    %521 = vmatpush2.bf16.msra.mxu0 %v375
    %522 = vmatprep.subr.bf16.mxu0 0
    %523 = vmatpush2.bf16.msra.mxu0 %v374
    %524 = vmatprep.subr.bf16.mxu0 0
    %525 = vmatpush2.bf16.msra.mxu0 %v373
    %526 = vmatprep.subr.bf16.mxu0 0
    %527 = vmatpush2.bf16.msra.mxu0 %v372
    %528 = vmatprep.subr.bf16.mxu0 0
    %529 = vmatpush2.bf16.msra.mxu0 %v371
    %530 = vmatprep.subr.bf16.mxu0 0
    %531 = vmatpush2.bf16.msra.mxu0 %v370
    %532 = vmatprep.subr.bf16.mxu0 0
    %533 = vmatpush2.bf16.msra.mxu0 %v369
    %534 = vmatprep.subr.bf16.mxu0 0
    %535 = vmatpush2.bf16.msra.mxu0 %v368
    %536 = vmatprep.mubr.bf16.mxu0 %v35
    %537 = vmatmul.mubr.bf16.gmra.mxu0 %v34
    %v538 = vpop.f32.mrf.mxu0
    %v539 = vadd.f32 %v499, %v538
    %v540 = vpop.f32.mrf.mxu0
    %v541 = vpop.f32.mrf.mxu0
    %v542 = vpop.f32.mrf.mxu0
    %543 = vdwg.mxu0
    %v544 = vmax.f32 %v539, 0.0
    %v545 = vpack.c.bf16 %v544, %v544
    %v546 = vld [vmem:[%s2] sm:$0xf]
    %v547 = vld [vmem:[%s2 + $0x14] sm:$0xf]
    %v548 = vld [vmem:[%s2 + $0x28] sm:$0xf]
    %v549 = vld [vmem:[%s2 + $0x3c] sm:$0xf]
    %v550 = vld [vmem:[%s2 + $0x50] sm:$0xf]
    %v551 = vld [vmem:[%s2 + $0x64] sm:$0xf]
    %v552 = vld [vmem:[%s2 + $0x78] sm:$0xf]
    %v553 = vld [vmem:[%s2 + $0x8c] sm:$0xf]
    %v562 = vunpack.c.l.b16 %v546
    %v563 = vunpack.c.l.b16 %v547
    %v564 = vunpack.c.l.b16 %v548
    %v565 = vunpack.c.l.b16 %v549
    %v566 = vunpack.c.l.b16 %v550
    %v567 = vunpack.c.l.b16 %v551
    %v568 = vunpack.c.l.b16 %v552
    %v569 = vunpack.c.l.b16 %v553
    %v570 = vpack.c.b16 %v563, %v562
    %v571 = vpack.c.b16 %v565, %v564
    %v572 = vpack.c.b16 %v567, %v566
    %v573 = vpack.c.b16 %v569, %v568
    %vm578 = vcmask 523264
    %v580 = vsel %vm578, %v545, 0
    %582 = vmatprep.subr.bf16.mxu0 0
    %583 = vmatpush1.bf16.msra.mxu0 0
    %584 = vmatprep.subr.bf16.mxu0 0
    %585 = vmatpush1.bf16.msra.mxu0 0
    %586 = vmatprep.subr.bf16.mxu0 0
    %587 = vmatpush1.bf16.msra.mxu0 0
    %588 = vmatprep.subr.bf16.mxu0 0
    %589 = vmatpush1.bf16.msra.mxu0 0
    %590 = vmatprep.subr.bf16.mxu0 0
    %591 = vmatpush1.bf16.msra.mxu0 %v573
    %592 = vmatprep.subr.bf16.mxu0 0
    %593 = vmatpush1.bf16.msra.mxu0 %v572
    %594 = vmatprep.subr.bf16.mxu0 0
    %595 = vmatpush1.bf16.msra.mxu0 %v571
    %596 = vmatprep.subr.bf16.mxu0 0
    %597 = vmatpush1.bf16.msra.mxu0 %v570
    %598 = vmatprep.subr.bf16.mxu0 0
    %599 = vmatpush2.bf16.msra.mxu0 0
    %600 = vmatprep.subr.bf16.mxu0 0
    %601 = vmatpush2.bf16.msra.mxu0 0
    %602 = vmatprep.subr.bf16.mxu0 0
    %603 = vmatpush2.bf16.msra.mxu0 0
    %604 = vmatprep.subr.bf16.mxu0 0
    %605 = vmatpush2.bf16.msra.mxu0 0
    %606 = vmatprep.subr.bf16.mxu0 0
    %607 = vmatpush2.bf16.msra.mxu0 0
    %608 = vmatprep.subr.bf16.mxu0 0
    %609 = vmatpush2.bf16.msra.mxu0 0
    %610 = vmatprep.subr.bf16.mxu0 0
    %611 = vmatpush2.bf16.msra.mxu0 0
    %612 = vmatprep.subr.bf16.mxu0 0
    %613 = vmatpush2.bf16.msra.mxu0 0
    %614 = vmatprep.mubr.bf16.mxu0 0
    %615 = vmatmul.mubr.bf16.gmra.mxu0 %v580
    %v616 = vpop.f32.mrf.mxu0
    %v617 = vadd.f32 0.0, %v616
    %v618 = vpop.f32.mrf.mxu0
    %v619 = vpop.f32.mrf.mxu0
    %v620 = vpop.f32.mrf.mxu0
    %621 = vdwg.mxu0
    %v622 = vlaneseq
    %v623 = vshrl.u32 %v622, 7
    %v624 = vsub.s32 0, %v623
    %v625 = vrot.slane %v23, %v624
    %627 = vrot.lane.b32.xlu0 %v625, 64
    %v628 = vpop.permute.xlu0 %627
    %v630 = vadd.f32 %v617, %v628
    %v631 = vpack.c.bf16 %v617, %v617
    %v632 = vld [vmem:[%s2 + $0x4] sm:$0xf]
    %v633 = vld [vmem:[%s2 + $0x18] sm:$0xf]
    %v634 = vld [vmem:[%s2 + $0x2c] sm:$0xf]
    %v635 = vld [vmem:[%s2 + $0x40] sm:$0xf]
    %v636 = vld [vmem:[%s2 + $0x54] sm:$0xf]
    %v637 = vld [vmem:[%s2 + $0x68] sm:$0xf]
    %v638 = vld [vmem:[%s2 + $0x7c] sm:$0xf]
    %v639 = vld [vmem:[%s2 + $0x90] sm:$0xf]
    %v640 = vlaneseq
    %v641 = vshrl.u32 %v640, 7
    %v642 = vsub.s32 0, %v641
    %v643 = vrot.slane %v20, %v642
    %v652 = vunpack.c.l.b16 %v632
    %v653 = vunpack.c.l.b16 %v633
    %v654 = vunpack.c.l.b16 %v634
    %v655 = vunpack.c.l.b16 %v635
    %v656 = vunpack.c.l.b16 %v636
    %v657 = vunpack.c.l.b16 %v637
    %v658 = vunpack.c.l.b16 %v638
    %v659 = vunpack.c.l.b16 %v639
    %v660 = vpack.c.b16 %v653, %v652
    %v661 = vpack.c.b16 %v655, %v654
    %v662 = vpack.c.b16 %v657, %v656
    %v663 = vpack.c.b16 %v659, %v658
    %v669 = vsel %vm578, %v631, 0
    %671 = vmatprep.subr.bf16.mxu0 0
    %672 = vmatpush1.bf16.msra.mxu0 0
    %673 = vmatprep.subr.bf16.mxu0 0
    %674 = vmatpush1.bf16.msra.mxu0 0
    %675 = vmatprep.subr.bf16.mxu0 0
    %676 = vmatpush1.bf16.msra.mxu0 0
    %677 = vmatprep.subr.bf16.mxu0 0
    %678 = vmatpush1.bf16.msra.mxu0 0
    %679 = vmatprep.subr.bf16.mxu0 0
    %680 = vmatpush1.bf16.msra.mxu0 %v663
    %681 = vmatprep.subr.bf16.mxu0 0
    %682 = vmatpush1.bf16.msra.mxu0 %v662
    %683 = vmatprep.subr.bf16.mxu0 0
    %684 = vmatpush1.bf16.msra.mxu0 %v661
    %685 = vmatprep.subr.bf16.mxu0 0
    %686 = vmatpush1.bf16.msra.mxu0 %v660
    %687 = vmatprep.subr.bf16.mxu0 0
    %688 = vmatpush2.bf16.msra.mxu0 0
    %689 = vmatprep.subr.bf16.mxu0 0
    %690 = vmatpush2.bf16.msra.mxu0 0
    %691 = vmatprep.subr.bf16.mxu0 0
    %692 = vmatpush2.bf16.msra.mxu0 0
    %693 = vmatprep.subr.bf16.mxu0 0
    %694 = vmatpush2.bf16.msra.mxu0 0
    %695 = vmatprep.subr.bf16.mxu0 0
    %696 = vmatpush2.bf16.msra.mxu0 0
    %697 = vmatprep.subr.bf16.mxu0 0
    %698 = vmatpush2.bf16.msra.mxu0 0
    %699 = vmatprep.subr.bf16.mxu0 0
    %700 = vmatpush2.bf16.msra.mxu0 0
    %701 = vmatprep.subr.bf16.mxu0 0
    %702 = vmatpush2.bf16.msra.mxu0 0
    %703 = vmatprep.mubr.bf16.mxu0 0
    %704 = vmatmul.mubr.bf16.gmra.mxu0 %v669
    %v705 = vpop.f32.mrf.mxu0
    %v706 = vadd.f32 %v643, %v705
    %v707 = vpop.f32.mrf.mxu0
    %v708 = vpop.f32.mrf.mxu0
    %v709 = vpop.f32.mrf.mxu0
    %710 = vdwg.mxu0
    %v711 = vmax.f32 %v706, 0.0
    %v712 = vlaneseq
    %v713 = vand.u32 %v712, 127
    %vm714 = vcmp.lt.s32.totalorder %v713, 32
    %v715 = vsel %vm714, %v617, 0.0
    %v716 = vadd.f32 %v711, %v715
    %v717 = vpack.c.bf16 %v716, %v716
    %v718 = vld [vmem:[%s2 + $0x8] sm:$0xff]
    %v719 = vld [vmem:[%s2 + $0x10] sm:$0xf]
    %v720 = vld [vmem:[%s2 + $0x1c] sm:$0xff]
    %v721 = vld [vmem:[%s2 + $0x24] sm:$0xf]
    %v722 = vld [vmem:[%s2 + $0x30] sm:$0xff]
    %v723 = vld [vmem:[%s2 + $0x38] sm:$0xf]
    %v724 = vld [vmem:[%s2 + $0x44] sm:$0xff]
    %v725 = vld [vmem:[%s2 + $0x4c] sm:$0xf]
    %v726 = vld [vmem:[%s2 + $0x58] sm:$0xff]
    %v727 = vld [vmem:[%s2 + $0x60] sm:$0xf]
    %v728 = vld [vmem:[%s2 + $0x6c] sm:$0xff]
    %v729 = vld [vmem:[%s2 + $0x74] sm:$0xf]
    %v730 = vld [vmem:[%s2 + $0x80] sm:$0xff]
    %v731 = vld [vmem:[%s2 + $0x88] sm:$0xf]
    %v732 = vld [vmem:[%s2 + $0x94] sm:$0xff]
    %v733 = vld [vmem:[%s2 + $0x9c] sm:$0xf]
    %v750 = vunpack.c.l.b16 %v718
    %v751 = vunpack.c.h.b16 %v718
    %v752 = vunpack.c.l.b16 %v719
    %v753 = vunpack.c.l.b16 %v720
    %v754 = vunpack.c.h.b16 %v720
    %v755 = vunpack.c.l.b16 %v721
    %v756 = vunpack.c.l.b16 %v722
    %v757 = vunpack.c.h.b16 %v722
    %v758 = vunpack.c.l.b16 %v723
    %v759 = vunpack.c.l.b16 %v724
    %v760 = vunpack.c.h.b16 %v724
    %v761 = vunpack.c.l.b16 %v725
    %v762 = vunpack.c.l.b16 %v726
    %v763 = vunpack.c.h.b16 %v726
    %v764 = vunpack.c.l.b16 %v727
    %v765 = vunpack.c.l.b16 %v728
    %v766 = vunpack.c.h.b16 %v728
    %v767 = vunpack.c.l.b16 %v729
    %v768 = vunpack.c.l.b16 %v730
    %v769 = vunpack.c.h.b16 %v730
    %v770 = vunpack.c.l.b16 %v731
    %v771 = vunpack.c.l.b16 %v732
    %v772 = vunpack.c.h.b16 %v732
    %v773 = vunpack.c.l.b16 %v733
    %v774 = vpack.c.b16 %v753, %v750
    %v775 = vpack.c.b16 %v754, %v751
    %v776 = vpack.c.b16 %v755, %v752
    %v777 = vpack.c.b16 %v759, %v756
    %v778 = vpack.c.b16 %v760, %v757
    %v779 = vpack.c.b16 %v761, %v758
    %v780 = vpack.c.b16 %v765, %v762
    %v781 = vpack.c.b16 %v766, %v763
    %v782 = vpack.c.b16 %v767, %v764
    %v783 = vpack.c.b16 %v771, %v768
    %v784 = vpack.c.b16 %v772, %v769
    %v785 = vpack.c.b16 %v773, %v770
    %v799 = vsel %vm578, %v717, 0
    %801 = vmatprep.subr.bf16.mxu0 0
    %802 = vmatpush1.bf16.msra.mxu0 0
    %803 = vmatprep.subr.bf16.mxu0 0
    %804 = vmatpush1.bf16.msra.mxu0 0
    %805 = vmatprep.subr.bf16.mxu0 0
    %806 = vmatpush1.bf16.msra.mxu0 0
    %807 = vmatprep.subr.bf16.mxu0 0
    %808 = vmatpush1.bf16.msra.mxu0 0
    %809 = vmatprep.subr.bf16.mxu0 %v784
    %810 = vmatpush1.bf16.msra.mxu0 %v783
    %811 = vmatprep.subr.bf16.mxu0 %v781
    %812 = vmatpush1.bf16.msra.mxu0 %v780
    %813 = vmatprep.subr.bf16.mxu0 %v778
    %814 = vmatpush1.bf16.msra.mxu0 %v777
    %815 = vmatprep.subr.bf16.mxu0 %v775
    %816 = vmatpush1.bf16.msra.mxu0 %v774
    %817 = vmatprep.subr.bf16.mxu0 0
    %818 = vmatpush2.bf16.msra.mxu0 0
    %819 = vmatprep.subr.bf16.mxu0 0
    %820 = vmatpush2.bf16.msra.mxu0 0
    %821 = vmatprep.subr.bf16.mxu0 0
    %822 = vmatpush2.bf16.msra.mxu0 0
    %823 = vmatprep.subr.bf16.mxu0 0
    %824 = vmatpush2.bf16.msra.mxu0 0
    %825 = vmatprep.subr.bf16.mxu0 0
    %826 = vmatpush2.bf16.msra.mxu0 0
    %827 = vmatprep.subr.bf16.mxu0 0
    %828 = vmatpush2.bf16.msra.mxu0 0
    %829 = vmatprep.subr.bf16.mxu0 0
    %830 = vmatpush2.bf16.msra.mxu0 0
    %831 = vmatprep.subr.bf16.mxu0 0
    %832 = vmatpush2.bf16.msra.mxu0 0
    %833 = vmatprep.mubr.bf16.mxu0 0
    %834 = vmatmul.mubr.bf16.gmra.mxu0 %v799
    %v835 = vpop.f32.mrf.mxu0
    %v836 = vadd.f32 0.0, %v835
    %v837 = vpop.f32.mrf.mxu0
    %v838 = vadd.f32 0.0, %v837
    %v839 = vpop.f32.mrf.mxu0
    %v840 = vpop.f32.mrf.mxu0
    %841 = vdwg.mxu0
    %842 = vmatprep.subr.bf16.mxu0 0
    %843 = vmatpush1.bf16.msra.mxu0 0
    %844 = vmatprep.subr.bf16.mxu0 0
    %845 = vmatpush1.bf16.msra.mxu0 0
    %846 = vmatprep.subr.bf16.mxu0 0
    %847 = vmatpush1.bf16.msra.mxu0 0
    %848 = vmatprep.subr.bf16.mxu0 0
    %849 = vmatpush1.bf16.msra.mxu0 0
    %850 = vmatprep.subr.bf16.mxu0 0
    %851 = vmatpush1.bf16.msra.mxu0 %v785
    %852 = vmatprep.subr.bf16.mxu0 0
    %853 = vmatpush1.bf16.msra.mxu0 %v782
    %854 = vmatprep.subr.bf16.mxu0 0
    %855 = vmatpush1.bf16.msra.mxu0 %v779
    %856 = vmatprep.subr.bf16.mxu0 0
    %857 = vmatpush1.bf16.msra.mxu0 %v776
    %858 = vmatprep.subr.bf16.mxu0 0
    %859 = vmatpush2.bf16.msra.mxu0 0
    %860 = vmatprep.subr.bf16.mxu0 0
    %861 = vmatpush2.bf16.msra.mxu0 0
    %862 = vmatprep.subr.bf16.mxu0 0
    %863 = vmatpush2.bf16.msra.mxu0 0
    %864 = vmatprep.subr.bf16.mxu0 0
    %865 = vmatpush2.bf16.msra.mxu0 0
    %866 = vmatprep.subr.bf16.mxu0 0
    %867 = vmatpush2.bf16.msra.mxu0 0
    %868 = vmatprep.subr.bf16.mxu0 0
    %869 = vmatpush2.bf16.msra.mxu0 0
    %870 = vmatprep.subr.bf16.mxu0 0
    %871 = vmatpush2.bf16.msra.mxu0 0
    %872 = vmatprep.subr.bf16.mxu0 0
    %873 = vmatpush2.bf16.msra.mxu0 0
    %874 = vmatprep.mubr.bf16.mxu0 0
    %875 = vmatmul.mubr.bf16.gmra.mxu0 %v799
    %v876 = vpop.f32.mrf.mxu0
    %v877 = vadd.f32 0.0, %v876
    %v878 = vpop.f32.mrf.mxu0
    %v879 = vpop.f32.mrf.mxu0
    %v880 = vpop.f32.mrf.mxu0
    %881 = vdwg.mxu0
    %v882 = vlaneseq
    %v883 = vshrl.u32 %v882, 7
    %v884 = vsub.s32 0, %v883
    %v885 = vrot.slane %v21, %v884
    %v886 = vadd.f32 %v877, %v885
    %v887 = vmax.f32 %v886, 0.0
    %v888 = vlaneseq
    %v889 = vshrl.u32 %v888, 7
    %v890 = vsub.s32 0, %v889
    %v891 = vrot.slane %v22, %v890
    %v892 = vmul.f32 %v887, %v891
    %vm893 = vcmask 261120
    %v894 = vsel %vm893, %v892, 0.0
    %895 = vadd.xlane.f32.xlu0 %v894
    %v896 = vpop.xlane.xlu0 %895
    %v897 = vadd.f32 %v896, %v625
    %899 = vrot.lane.b32.xlu0 %v897, 127
    %v900 = vpop.permute.xlu0 %899
    %903 = vrot.lane.b32.xlu0 %v630, 65
    %v904 = vpop.permute.xlu0 %903
    %vm906 = vcmask 7168
    %v907 = vsel %vm906, %v900, %v904
    %v908 = vxor.u32 %v907, 2147483648
    %v909 = vmul.f32 %v908, 1.442695
    %v910 = vpow.pop %v909
    %v911 = vadd.f32 %v910, 1.0
    %v912 = vrcp.pop %v911
    %v913 = vmul.f32 1.0, %v912
    %914 = vst [vmem:[#allocation2] sm:$0xff] %v836
    %915 = vst [vmem:[#allocation2 + $0x8] sm:$0xff] %v838
    %917 = vrot.lane.b32.xlu0 %v913, 64
    %v918 = vpop.permute.xlu0 %917
    %v920 = vsel %vm578, %v617, %v918
    %vm921 = vcmask 539648
    %v922 = vsel %vm921, %v920, 0.0
    %923 = vst [vmem:[#allocation2 + $0x10] sm:$0xff] %v922
    // Predicated region
    $region18: #{tpu_custom_call.1} parent=1 // pred_check
      _
    $region19: #{tpu_custom_call.1} parent=1 // pred_check_branch
      %925 = sbr.rel (0) target = $region21
    $region20: #{tpu_custom_call.1} parent=1 // pred_region
      %s927 = ssub.s32 384, 384
      %928 = vsyncadd [#allocation3], %s927
      %s930 = sshll.u32 [#allocation2], 4
      %s931 = int_to_ptr.vmem [resolvable:$true] %s930
      %933 = dma.vmem_to_hbm [thread:$0]  %s931, 384, %s4, [#allocation3]
    $region21: #{tpu_custom_call.1} parent=1 // pred_fallthru
      _
    // Predicated region
    $region22: #{tpu_custom_call.1} parent=1 // pred_check
      _
    $region23: #{tpu_custom_call.1} parent=1 // pred_check_branch
      %935 = sbr.rel (0) target = $region25
    $region24: #{tpu_custom_call.1} parent=1 // pred_region
      %936 = dma.done [#allocation3], 384
    $region25: #{tpu_custom_call.1} parent=1 // pred_fallthru
      _
    %937 = vsyncpa [#allocation3], 1

</llo_original>
